<compile_context>
chip_gen: v7x
topology: tpu7x:2x2x1
jax: 0.10.0
libtpu: 0.0.40
codegen_flags: <defaults>
</compile_context>

<pallas_src>
import jax
import jax.numpy as jnp
from jax import lax
from jax.experimental import pallas as pl
from jax.experimental.pallas import tpu as pltpu

EPS = 1e-5
_LANES = 128


def _round_up(x, m):
    return (x + m - 1) // m * m


def _vmem_capacity_bytes():
    try:
        info = pltpu.get_tpu_info()
        cap = getattr(info, "vmem_capacity_bytes", None)
        if cap:
            return int(cap)
    except Exception:
        pass
    return 128 << 20


def _budgets():
    """(tile_budget_bytes, vmem_limit_cap_bytes), per TPU generation."""
    cap = _vmem_capacity_bytes()
    if cap <= (72 << 20):            # v7x-class: 64 MiB VMEM per TensorCore
        return 14 << 20, 48 << 20
    return 28 << 20, 88 << 20        # v5e / v6e: 128 MiB VMEM


def _pick_tile(hw, c, k, itemsize, tile_budget):
    """Return (TILE, HW_pad): lane-dense tile width (multiple of 128) and the
    (possibly padded) spatial extent, a multiple of TILE."""
    hw128 = _round_up(hw, _LANES)
    # Bytes per lane column of double-buffered x + out tiles.
    per_lane = 2 * (c + k) * itemsize
    cap = max(_LANES, (tile_budget // max(1, per_lane)) // _LANES * _LANES)
    cap = min(cap, 16384, hw128)

    # Largest multiple-of-128 divisor of hw128 not exceeding the cap.
    best_div = _LANES
    t = _LANES
    while t <= cap:
        if hw128 % t == 0:
            best_div = t
        t += _LANES

    if best_div >= min(cap, 2048) or best_div * 8 >= hw128:
        return best_div, hw128

    # Divisor-only search degraded the tile badly (e.g. hw128 = 128 * prime):
    # use a non-divisor tile and pad, if padding overhead stays under ~12.5%.
    tile = min(cap, 2048)
    hw_pad = _round_up(hw128, tile)
    if hw_pad - hw128 <= hw_pad // 8:
        return tile, hw_pad
    return best_div, hw128


# ----------------------------- Pass 1: batch statistics -----------------------------
def _stats_kernel(x_ref, part_ref):
    # x_ref:    (1, C, TILE) tile of the input (native dtype)
    # part_ref: (1, C, 2*128) f32 per-batch-element partials [sum | sum_sq],
    #           resident across the tile axis of the grid.
    c = x_ref.shape[1]
    tile = x_ref.shape[2]
    n_chunks = tile // _LANES

    @pl.when(pl.program_id(1) == 0)
    def _():
        part_ref[...] = jnp.zeros_like(part_ref)

    zeros = jnp.zeros((c, _LANES), jnp.float32)

    if n_chunks <= 16:
        s, q = zeros, zeros
        for j in range(n_chunks):
            chunk = x_ref[0, :, j * _LANES:(j + 1) * _LANES].astype(jnp.float32)
            s = s + chunk
            q = q + chunk * chunk
    else:
        def body(j, carry):
            s, q = carry
            off = pl.multiple_of(j * _LANES, _LANES)
            chunk = x_ref[0, :, pl.ds(off, _LANES)].astype(jnp.float32)
            return s + chunk, q + chunk * chunk
        s, q = lax.fori_loop(0, n_chunks, body, (zeros, zeros), unroll=8)

    part_ref[0, :, :_LANES] += s
    part_ref[0, :, _LANES:] += q


# ----------------------------- Pass 2: folded 1x1 conv ------------------------------
def _conv_kernel(x_ref, w_ref, b_ref, o_ref):
    # x_ref: (1, C, TILE) raw activations, w_ref: (K, C) folded weight,
    # b_ref: (K, 1) folded bias (f32), o_ref: (1, K, TILE) logits.
    x = x_ref[0]
    if x.dtype != w_ref.dtype:          # optional bf16 MXU path (v5e small-K)
        x = x.astype(w_ref.dtype)
    out = jnp.dot(w_ref[...], x, preferred_element_type=jnp.float32)
    o_ref[0] = (out + b_ref[...]).astype(o_ref.dtype)


def bnhead_forward(x_nchw, gamma, beta, conv_w, conv_b, *, use_bf16_matmul=False):
    """x_nchw: (N, C, H, W). Returns logits (N, K, H, W). Training-mode BN."""
    N, C, H, W = x_nchw.shape
    K = conv_w.shape[0]
    HW = H * W
    M = N * HW

    itemsize = jnp.dtype(x_nchw.dtype).itemsize
    tile_budget, vmem_cap = _budgets()
    TILE, HW_pad = _pick_tile(HW, C, K, itemsize, tile_budget)

    x3 = x_nchw.reshape(N, C, HW)                       # free view, no transpose
    if HW_pad != HW:
        # Zero padding doesn't perturb sum/ssq (M stays N*H*W); padded logits
        # are sliced off below.
        x3 = jnp.pad(x3, ((0, 0), (0, 0), (0, HW_pad - HW)))
    n_tiles = HW_pad // TILE
    grid = (N, n_tiles)

    x_tile_bytes = C * TILE * itemsize
    o_tile_bytes = K * TILE * itemsize
    part_bytes = C * 2 * _LANES * 4
    vmem_limit = int(min(vmem_cap,
                         max(16 << 20,
                             2 * x_tile_bytes + 2 * o_tile_bytes
                             + 2 * part_bytes + (4 << 20))))

    x_spec = pl.BlockSpec((1, C, TILE), lambda n, m: (n, 0, m))
    # TODO(synk): on v7x, add pipeline_mode=pl.Buffered(3) to x_spec if a
    # profile shows exposed DMA at tile boundaries (budget the extra buffer).

    # ---- Pass 1: per-batch-element lane-dense sum / sum-of-squares partials ----
    parts = pl.pallas_call(
        _stats_kernel,
        out_shape=jax.ShapeDtypeStruct((N, C, 2 * _LANES), jnp.float32),
        grid=grid,
        in_specs=[x_spec],
        out_specs=pl.BlockSpec((1, C, 2 * _LANES), lambda n, m: (n, 0, 0)),
        compiler_params=pltpu.CompilerParams(
            dimension_semantics=("parallel", "arbitrary"),
            vmem_limit_bytes=vmem_limit),
    )(x3)

    sums = parts[:, :, :_LANES].sum(axis=(0, 2)).reshape(C, 1)
    ssqs = parts[:, :, _LANES:].sum(axis=(0, 2)).reshape(C, 1)

    # ---- Fold BN into the conv (param-sized math, plain JAX) ----
    # TODO(synk): E[x^2]-E[x]^2 can lose precision if |mean| >> std; switch to a
    # shifted/Welford accumulation if inputs may carry large per-channel offsets.
    mean = sums / M                                                  # (C, 1)
    var = jnp.maximum(ssqs / M - mean * mean, 0.0)                   # biased var
    scale = gamma.reshape(C, 1).astype(jnp.float32) * lax.rsqrt(var + EPS)
    w2 = conv_w.reshape(K, C).astype(jnp.float32)
    w_dtype = jnp.bfloat16 if use_bf16_matmul else x3.dtype
    w_eff = (w2 * scale.reshape(1, C)).astype(w_dtype)               # (K, C)
    b_eff = (w2 @ (beta.reshape(C, 1).astype(jnp.float32) - mean * scale)
             + conv_b.reshape(K, 1).astype(jnp.float32))             # (K, 1) f32

    # ---- Pass 2: out = W_eff @ x + b_eff, streamed over lane-dense tiles ----
    out3 = pl.pallas_call(
        _conv_kernel,
        out_shape=jax.ShapeDtypeStruct((N, K, HW_pad), x_nchw.dtype),
        grid=grid,
        in_specs=[x_spec,
                  pl.BlockSpec((K, C), lambda n, m: (0, 0)),
                  pl.BlockSpec((K, 1), lambda n, m: (0, 0))],
        out_specs=pl.BlockSpec((1, K, TILE), lambda n, m: (n, 0, m)),
        compiler_params=pltpu.CompilerParams(
            dimension_semantics=("parallel", "parallel"),
            vmem_limit_bytes=vmem_limit),
    )(x3, w_eff, b_eff)

    if HW_pad != HW:
        out3 = out3[:, :, :HW]
    return out3.reshape(N, K, H, W)


def bnhead_reference(x_nchw, gamma, beta, conv_w, conv_b):
    """Plain-JAX reference (training-mode BN -> 1x1 conv)."""
    mean = jnp.mean(x_nchw, axis=(0, 2, 3), keepdims=True)
    var = jnp.mean((x_nchw - mean) ** 2, axis=(0, 2, 3), keepdims=True)
    xhat = (x_nchw - mean) * lax.rsqrt(var + EPS)
    xhat = xhat * gamma[None, :, None, None] + beta[None, :, None, None]
    out = jnp.einsum('nchw,kc->nkhw', xhat, conv_w.reshape(conv_w.shape[0], -1))
    return out + conv_b[None, :, None, None]


if __name__ == "__main__":
    key = jax.random.PRNGKey(0)
    N, C, H, W = 2, 4, 16, 16           # batch=2, in_channels=4, spatial=16
    num_classes = 5

    k_x, k_w, k_b, _, _ = jax.random.split(key, 5)
    x = jax.random.normal(k_x, (N, C, H, W), dtype=jnp.float32)

    # BN defaults: gamma=1, beta=0; conv params random but deterministic.
    gamma = jnp.ones((C,), dtype=jnp.float32)
    beta = jnp.zeros((C,), dtype=jnp.float32)
    conv_w = 0.1 * jax.random.normal(k_w, (num_classes, C, 1, 1), dtype=jnp.float32)
    conv_b = 0.01 * jax.random.normal(k_b, (num_classes,), dtype=jnp.float32)

    out = bnhead_forward(x, gamma, beta, conv_w, conv_b)
    out = jax.block_until_ready(out)

    ref = bnhead_reference(x, gamma, beta, conv_w, conv_b)
    assert out.shape == (N, num_classes, H, W)
    assert jnp.allclose(out, ref, atol=1e-4, rtol=1e-4)

    print("KERNEL_OK")
</pallas_src>

<mosaic_0001>
module attributes {stable_mosaic.version = 11 : i64} {
  func.func @_stats_kernel(%arg0: i32, %arg1: i32, %arg2: memref<1x4x256xf32, #tpu.memory_space<vmem>>, %arg3: memref<1x4x256xf32, #tpu.memory_space<vmem>>) attributes {dimension_semantics = [#tpu.dimension_semantics<parallel>, #tpu.dimension_semantics<arbitrary>], iteration_bounds = array<i64: 2, 1>, scalar_prefetch = 0 : i64, scratch_operands = 0 : i64, tpu.core_type = #tpu.core_type<tc>, window_params = [{transform_indices = @transform_0, window_bounds = array<i64: 1, 4, 256>}, {transform_indices = @transform_1, window_bounds = array<i64: 1, 4, 256>}]} {
    %c0_i32 = arith.constant 0 : i32
    %0 = arith.cmpi eq, %arg1, %c0_i32 : i32
    %1 = arith.extui %0 : i1 to i32
    %c0_i32_0 = arith.constant 0 : i32
    %2 = arith.cmpi ne, %1, %c0_i32_0 : i32
    scf.if %2 {
      %cst_17 = arith.constant 0.000000e+00 : f32
      %26 = vector.broadcast %cst_17 : f32 to vector<1x4x256xf32>
      %c0_18 = arith.constant 0 : index
      %c0_19 = arith.constant 0 : index
      %c0_20 = arith.constant 0 : index
      %27 = vector.load %arg3[%c0_18, %c0_19, %c0_20] : memref<1x4x256xf32, #tpu.memory_space<vmem>>, vector<1x4x256xf32>
      tpu.vector_store %arg3[%c0_18, %c0_19, %c0_20], %26 {strides = array<i32>} : memref<1x4x256xf32, #tpu.memory_space<vmem>>, vector<1x4x256xf32>,
    } else {
    }
    %cst = arith.constant 0.000000e+00 : f32
    %3 = vector.broadcast %cst : f32 to vector<4x128xf32>
    %c0 = arith.constant 0 : index
    %c0_1 = arith.constant 0 : index
    %c0_2 = arith.constant 0 : index
    %4 = vector.load %arg2[%c0, %c0_1, %c0_2] : memref<1x4x256xf32, #tpu.memory_space<vmem>>, vector<1x4x128xf32>
    %5 = vector.shape_cast %4 : vector<1x4x128xf32> to vector<4x128xf32>
    %6 = arith.addf %3, %5 : vector<4x128xf32>
    %7 = arith.mulf %5, %5 : vector<4x128xf32>
    %8 = arith.addf %3, %7 : vector<4x128xf32>
    %c0_3 = arith.constant 0 : index
    %c0_4 = arith.constant 0 : index
    %c128 = arith.constant 128 : index
    %9 = vector.load %arg2[%c0_3, %c0_4, %c128] : memref<1x4x256xf32, #tpu.memory_space<vmem>>, vector<1x4x128xf32>
    %10 = vector.shape_cast %9 : vector<1x4x128xf32> to vector<4x128xf32>
    %11 = arith.addf %6, %10 : vector<4x128xf32>
    %12 = arith.mulf %10, %10 : vector<4x128xf32>
    %13 = arith.addf %8, %12 : vector<4x128xf32>
    %c0_5 = arith.constant 0 : index
    %c0_6 = arith.constant 0 : index
    %c0_7 = arith.constant 0 : index
    %14 = vector.load %arg3[%c0_5, %c0_6, %c0_7] : memref<1x4x256xf32, #tpu.memory_space<vmem>>, vector<1x4x128xf32>
    %15 = vector.shape_cast %14 : vector<1x4x128xf32> to vector<4x128xf32>
    %16 = arith.addf %15, %11 : vector<4x128xf32>
    %c0_8 = arith.constant 0 : index
    %c0_9 = arith.constant 0 : index
    %c0_10 = arith.constant 0 : index
    %17 = vector.load %arg3[%c0_8, %c0_9, %c0_10] : memref<1x4x256xf32, #tpu.memory_space<vmem>>, vector<1x4x128xf32>
    %18 = vector.shape_cast %17 : vector<1x4x128xf32> to vector<4x128xf32>
    %19 = vector.shape_cast %16 : vector<4x128xf32> to vector<1x4x128xf32>
    tpu.vector_store %arg3[%c0_8, %c0_9, %c0_10], %19 {strides = array<i32>} : memref<1x4x256xf32, #tpu.memory_space<vmem>>, vector<1x4x128xf32>,
    %c0_11 = arith.constant 0 : index
    %c0_12 = arith.constant 0 : index
    %c128_13 = arith.constant 128 : index
    %20 = vector.load %arg3[%c0_11, %c0_12, %c128_13] : memref<1x4x256xf32, #tpu.memory_space<vmem>>, vector<1x4x128xf32>
    %21 = vector.shape_cast %20 : vector<1x4x128xf32> to vector<4x128xf32>
    %22 = arith.addf %21, %13 : vector<4x128xf32>
    %c0_14 = arith.constant 0 : index
    %c0_15 = arith.constant 0 : index
    %c128_16 = arith.constant 128 : index
    %23 = vector.load %arg3[%c0_14, %c0_15, %c128_16] : memref<1x4x256xf32, #tpu.memory_space<vmem>>, vector<1x4x128xf32>
    %24 = vector.shape_cast %23 : vector<1x4x128xf32> to vector<4x128xf32>
    %25 = vector.shape_cast %22 : vector<4x128xf32> to vector<1x4x128xf32>
    tpu.vector_store %arg3[%c0_14, %c0_15, %c128_16], %25 {strides = array<i32>} : memref<1x4x256xf32, #tpu.memory_space<vmem>>, vector<1x4x128xf32>,
    return
  }
  func.func @transform_0(%arg0: i32, %arg1: i32) -> (i32, i32, i32) {
    %c0_i32 = arith.constant 0 : i32
    %c0_i32_0 = arith.constant 0 : i32
    return %arg0, %c0_i32, %arg1 : i32, i32, i32
  }
  func.func @transform_1(%arg0: i32, %arg1: i32) -> (i32, i32, i32) {
    %c0_i32 = arith.constant 0 : i32
    %c0_i32_0 = arith.constant 0 : i32
    %c0_i32_1 = arith.constant 0 : i32
    return %arg0, %c0_i32, %c0_i32_0 : i32, i32, i32
  }
}

</mosaic_0001>

<llo_original>
// kernel: tpu_custom_call.1
$region0: #{tpu_custom_call.1}
  #allocation0 [shape = 'u32[]', space=smem, size = 0x4, offset = 0x4, fixed_abs, tag = 'smem constant byte address 0x4 - core index']
  #allocation1 [shape = 'u32[144,128]{1,0:T(1,128)}', space=vmem, size = 0x12000, scoped, tag = 'internal scratch']
  %s0 = inlined_call_operand.hbm [shape: f32[2,4,256], index: 0, kind: input, shape index: {}]
  %s1 = inlined_call_operand.hbm [shape: f32[2,4,256], index: 1, kind: output, shape index: {}]
  %s2 = sld [smem:[#allocation0]]
  $region45: #{tpu_custom_call.1} parent=0
    _
  %s4 = ssub.s32 1, %s2
  %s5 = scalar_select 0, %s4, %s2
  $region1: #{tpu_custom_call.1} parent=0
    #allocation2 [shape = 'u8[8192]{0}', space=vmem, size = 0x2000, scoped, tag = 'input window, operand 0']
    #allocation3 [shape = 's32[2]{0}', space=sflag, size = 0x8, scoped, tag = 'scoped memory for tpu_custom_call.1']
    #allocation4 [shape = 's32[2]{0}', space=sflag, size = 0x8, scoped, tag = 'scoped memory for tpu_custom_call.1']
    #allocation5 [shape = 'u8[8192]{0}', space=vmem, size = 0x2000, scoped, tag = 'output window, operand 0']
    %6 = vsyncpa [#allocation3], 0
    %s7 = scalar_lea.sflag [#allocation3], 1
    %8 = vsyncpa %s7, 0
    %9 = vsyncpa [#allocation4], 0
    %s10 = scalar_lea.sflag [#allocation4], 1
    %11 = vsyncpa %s10, 0
    loop: start=0, step=1, limit=4
    $region2: #{tpu_custom_call.1} parent=1 // loop_pre_header
      _
    $region3: #{tpu_custom_call.1} parent=1 // loop_header
      %s13 = sphi 0, %s17
      %p14 = scmp.ge.s32.totalorder %s13, 4
      %s20 = sphi 0, %s32
      %s21 = sphi 0, %s28
      %s22 = sphi 0, %s20
      %s23 = sphi 0, %s21
      %s24 = sphi 0, %s22
      %s25 = sphi 0, %s23
      %s37 = sphi 0, %s39
      %s40 = sphi 0, %s37
      %s41 = sphi 0, %s40
      %s57 = sphi 0, %s41
      %s63 = sphi 0, %s65
      %s66 = sphi 0, %s63
      %s67 = sphi 0, %s66
      %s83 = sphi 0, %s67
    $region4: #{tpu_custom_call.1} parent=1 // loop_header_branch
      %16 = sbr.rel (%p14) target = $region8
    $region5: #{tpu_custom_call.1} parent=1 // loop_body
      %s18 = ssub.s32 %s13, 1
      %s19 = ssub.s32 %s13, 2
      %s26 = sadd.s32 1, %s21
      %p27 = scmp.ge.s32.totalorder %s26, 1
      %s28 = scalar_select %p27, 0, %s26
      %s29 = sadd.s32 1, %s20
      %s30 = scalar_select %p27, %s29, %s20
      %p31 = scmp.ge.s32.totalorder %s30, 2
      %s32 = scalar_select %p31, 0, %s30
      %s33 = ssub.s32 %s20, %s32
      %s34 = ssub.s32 %s21, %s28
      %s35 = sor.u32 %s33, %s34
      %p36 = scmp.eq.s32.totalorder %s35, 0
      %s38 = sadd.s32 %s37, 1
      %s39 = scalar_select %p36, %s37, %s38
      %p42 = pneg %p36
      %p43 = scmp.eq.s32.totalorder %s13, 1
      %p44 = por %p42, %p43
      %p45 = scmp.ne.s32.totalorder %s37, %s40
      %p46 = scmp.eq.s32.totalorder %s13, 0
      %p47 = por %p45, %p46
      %p48 = scmp.ne.s32.totalorder %s37, %s40
      %p49 = scmp.eq.s32.totalorder %s18, 1
      %p50 = por %p48, %p49
      %p51 = scmp.ne.s32.totalorder %s40, %s41
      %p52 = scmp.eq.s32.totalorder %s18, 0
      %p53 = por %p51, %p52
      %p54 = scmp.ne.s32.totalorder %s40, %s41
      %p55 = scmp.eq.s32.totalorder %s19, 1
      %p56 = por %p54, %p55
      %p58 = scmp.ne.s32.totalorder %s41, %s57
      %p59 = scmp.eq.s32.totalorder %s19, 0
      %p60 = por %p58, %p59
      %s61 = ssub.s32 %s20, %s32
      %p62 = scmp.eq.s32.totalorder %s61, 0
      %s64 = sadd.s32 %s63, 1
      %s65 = scalar_select %p62, %s63, %s64
      %p68 = pneg %p62
      %p69 = scmp.eq.s32.totalorder %s13, 1
      %p70 = por %p68, %p69
      %p71 = scmp.ne.s32.totalorder %s63, %s66
      %p72 = scmp.eq.s32.totalorder %s13, 0
      %p73 = por %p71, %p72
      %p74 = scmp.ne.s32.totalorder %s63, %s66
      %p75 = scmp.eq.s32.totalorder %s18, 1
      %p76 = por %p74, %p75
      %p77 = scmp.ne.s32.totalorder %s66, %s67
      %p78 = scmp.eq.s32.totalorder %s18, 0
      %p79 = por %p77, %p78
      %p80 = scmp.ne.s32.totalorder %s66, %s67
      %p81 = scmp.eq.s32.totalorder %s19, 1
      %p82 = por %p80, %p81
      %p84 = scmp.ne.s32.totalorder %s67, %s83
      %p85 = scmp.eq.s32.totalorder %s19, 0
      %p86 = por %p84, %p85
      %p87 = scmp.le.s32.totalorder 1, %s13
      %p88 = scmp.lt.s32.totalorder %s13, 3
      %p89 = pnand %p87, %p88
      %p90 = pneg %p89
      // Predicated region
      $region9: #{tpu_custom_call.1} parent=5 // pred_check
        _
      $region10: #{tpu_custom_call.1} parent=5 // pred_check_branch
        %92 = sbr.rel (%p89) target = $region12
      $region11: #{tpu_custom_call.1} parent=5 // pred_region
        %s93 = ssub.s32 %s13, 1
      $region12: #{tpu_custom_call.1} parent=5 // pred_fallthru
        _
      %p94 = scmp.lt.s32.totalorder %s13, 2
      // Predicated region
      $region13: #{tpu_custom_call.1} parent=5 // pred_check
        %p95 = pneg %p94
      $region14: #{tpu_custom_call.1} parent=5 // pred_check_branch
        %97 = sbr.rel (%p95) target = $region16
      $region15: #{tpu_custom_call.1} parent=5 // pred_region
        // Predicated region
        $region17: #{tpu_custom_call.1} parent=15 // pred_check
          %p98 = pneg %p47
        $region18: #{tpu_custom_call.1} parent=15 // pred_check_branch
          %100 = sbr.rel (%p98) target = $region20
        $region19: #{tpu_custom_call.1} parent=15 // pred_region
          %s101 = sand.u32 %s37, 1
          %s102 = scalar_lea.sflag [#allocation3], %s101
          %s103 = sand.u32 %s37, 1
          %s104 = smul.addr %s103, 8
          %s105 = scalar_lea.vmem [#allocation2], %s104
          %s106 = smul.u32 2, %s21
          %s108 = ssub.s32 128, 128
          %109 = vsyncadd %s102, %s108
          %s110 = smul.addr %s20, 2
          %s111 = sadd.s32 %s106, %s110
          %s112 = smul.addr %s111, 64
          %s113 = scalar_lea.hbm %s0, %s112
          %s115 = sshll.u32 %s105, 4
          %s116 = int_to_ptr.vmem [resolvable:$true] %s115
          %118 = dma.hbm_to_vmem [thread:$0]  %s113, 128, %s116, %s102
        $region20: #{tpu_custom_call.1} parent=15 // pred_fallthru
          _
      $region16: #{tpu_custom_call.1} parent=5 // pred_fallthru
        _
      %p119 = scmp.le.s32.totalorder 1, %s13
      %p120 = scmp.lt.s32.totalorder %s13, 3
      %p121 = pnand %p119, %p120
      %p122 = pneg %p121
      // Predicated region
      $region21: #{tpu_custom_call.1} parent=5 // pred_check
        _
      $region22: #{tpu_custom_call.1} parent=5 // pred_check_branch
        %124 = sbr.rel (%p121) target = $region24
      $region23: #{tpu_custom_call.1} parent=5 // pred_region
        %s125 = ssub.s32 %s13, 1
        %s126 = sand.u32 %s40, 1
        %s127 = scalar_lea.sflag [#allocation3], %s126
        %s128 = sand.u32 %s40, 1
        %s129 = smul.addr %s128, 8
        %s130 = scalar_lea.vmem [#allocation2], %s129
        // Predicated region
        $region25: #{tpu_custom_call.1} parent=23 // pred_check
          %p131 = pneg %p53
        $region26: #{tpu_custom_call.1} parent=23 // pred_check_branch
          %133 = sbr.rel (%p131) target = $region28
        $region27: #{tpu_custom_call.1} parent=23 // pred_region
          %134 = dma.done %s127, 128
        $region28: #{tpu_custom_call.1} parent=23 // pred_fallthru
          _
        %s135 = sand.u32 %s40, 1
        %s136 = scalar_lea.sflag [#allocation3], %s135
        %s137 = sand.u32 %s40, 1
        %s138 = smul.addr %s137, 8
        %s139 = scalar_lea.vmem [#allocation2], %s138
        %p140 = pneg %p53
        %p141 = pneg %p50
        %p142 = pneg %p79
        %p143 = pneg %p76
        %s144 = sand.u32 %s66, 1
        %s145 = scalar_lea.sflag [#allocation4], %s144
        %s146 = sand.u32 %s66, 1
        %s147 = smul.addr %s146, 8
        %s148 = scalar_lea.vmem [#allocation5], %s147
        %s149 = smul.u32 2, %s23
        %p150 = scmp.eq.s32.totalorder %s23, 0
        // Predicated region
        $region29: #{tpu_custom_call.1} parent=23 // pred_check
          %p151 = pneg %p150
        $region30: #{tpu_custom_call.1} parent=23 // pred_check_branch
          %153 = sbr.rel (%p151) target = $region32
        $region31: #{tpu_custom_call.1} parent=23 // pred_region
          %154 = vst [vmem:[%s148] sm:$0xff] 0.0
        $region32: #{tpu_custom_call.1} parent=23 // pred_fallthru
          _
        %v155 = vld [vmem:[%s130] sm:$0xf]
        %v156 = vadd.f32 %v155, 0.0
        %v157 = vmul.f32 %v155, %v155
        %v158 = vadd.f32 %v157, 0.0
        %v159 = vld [vmem:[%s130 + $0x4] sm:$0xf]
        %v160 = vadd.f32 %v156, %v159
        %v161 = vmul.f32 %v159, %v159
        %v162 = vadd.f32 %v158, %v161
        %v163 = vld [vmem:[%s148] sm:$0xf]
        %v164 = vadd.f32 %v163, %v160
        %165 = vst [vmem:[%s148] sm:$0xf] %v164
        %v166 = vld [vmem:[%s148 + $0x4] sm:$0xf]
        %v167 = vadd.f32 %v166, %v162
        %168 = vst [vmem:[%s148 + $0x4] sm:$0xf] %v167
        %s169 = sand.u32 %s66, 1
        %s170 = scalar_lea.sflag [#allocation4], %s169
        %s171 = sand.u32 %s66, 1
        %s172 = smul.addr %s171, 8
        %s173 = scalar_lea.vmem [#allocation5], %s172
        // Predicated region
        $region33: #{tpu_custom_call.1} parent=23 // pred_check
          %p174 = pneg %p76
        $region34: #{tpu_custom_call.1} parent=23 // pred_check_branch
          %176 = sbr.rel (%p174) target = $region36
        $region35: #{tpu_custom_call.1} parent=23 // pred_region
          %s178 = ssub.s32 128, 128
          %179 = vsyncadd %s170, %s178
          %s180 = smul.addr %s22, 2
          %s181 = smul.addr %s180, 64
          %s182 = scalar_lea.hbm %s1, %s181
          %s184 = sshll.u32 %s173, 4
          %s185 = int_to_ptr.vmem [resolvable:$true] %s184
          %187 = dma.vmem_to_hbm [thread:$0]  %s185, 128, %s182, %s170
        $region36: #{tpu_custom_call.1} parent=23 // pred_fallthru
          _
      $region24: #{tpu_custom_call.1} parent=5 // pred_fallthru
        _
      %p188 = scmp.le.s32.totalorder 2, %s13
      // Predicated region
      $region37: #{tpu_custom_call.1} parent=5 // pred_check
        %p189 = pneg %p188
      $region38: #{tpu_custom_call.1} parent=5 // pred_check_branch
        %191 = sbr.rel (%p189) target = $region40
      $region39: #{tpu_custom_call.1} parent=5 // pred_region
        %s192 = ssub.s32 %s13, 2
        // Predicated region
        $region41: #{tpu_custom_call.1} parent=39 // pred_check
          %p193 = pneg %p82
        $region42: #{tpu_custom_call.1} parent=39 // pred_check_branch
          %195 = sbr.rel (%p193) target = $region44
        $region43: #{tpu_custom_call.1} parent=39 // pred_region
          %s196 = sand.u32 %s67, 1
          %s197 = scalar_lea.sflag [#allocation4], %s196
          %s198 = sand.u32 %s67, 1
          %s199 = smul.addr %s198, 8
          %s200 = scalar_lea.vmem [#allocation5], %s199
          %201 = dma.done %s197, 128
        $region44: #{tpu_custom_call.1} parent=39 // pred_fallthru
          _
      $region40: #{tpu_custom_call.1} parent=5 // pred_fallthru
        _
    $region6: #{tpu_custom_call.1} parent=1 // loop_footer
      %s17 = sadd.s32 1, %s13
    $region7: #{tpu_custom_call.1} parent=1 // loop_footer_branch
      %12 = sbr.rel target = $region3
    $region8: #{tpu_custom_call.1} parent=1 // loop_exit
      _
    %202 = vsyncpa [#allocation3], 1
    %s203 = scalar_lea.sflag [#allocation3], 1
    %204 = vsyncpa %s203, 1
    %205 = vsyncpa [#allocation4], 1
    %s206 = scalar_lea.sflag [#allocation4], 1
    %207 = vsyncpa %s206, 1

</llo_original>
